<compile_context>
chip_gen: v5e
topology: v5e:2x2
jax: 0.10.0
libtpu: 0.0.40
codegen_flags: <defaults>
</compile_context>

<pallas_src>
import functools

import jax
import jax.numpy as jnp
from jax.experimental import pallas as pl
from jax.experimental.pallas import tpu as pltpu


# ---------------------------------------------------------------------------
# Helpers: VMEM accounting / tiling decisions
# ---------------------------------------------------------------------------

def _round_up(x, m):
    return (x + m - 1) // m * m


def _sublanes(dtype):
    # packed sublane count per vreg: f32 -> 8, bf16/f16 -> 16, int8/fp8 -> 32
    itemsize = jnp.dtype(dtype).itemsize
    return 8 * max(1, 4 // itemsize)


def _vmem_block_bytes(tb, c, hw, dtype):
    """VMEM footprint of a (tb, c, hw) block after (sublane, 128) tile rounding."""
    itemsize = jnp.dtype(dtype).itemsize
    return tb * _round_up(c, _sublanes(dtype)) * _round_up(hw, 128) * itemsize


def _vmem_capacity_bytes():
    try:
        return int(pltpu.get_tpu_info().vmem_capacity_bytes)
    except Exception:
        return 64 << 20  # v7x-safe default


def _vmem_limit(vmem_cap, needed_bytes):
    limit = needed_bytes + (8 << 20)          # headroom: weights + compiler scratch
    limit = min(limit, int(0.7 * vmem_cap))   # never ask for most of physical VMEM
    return int(max(limit, 32 << 20))


def _pick_batch_tile(n, per_image_vmem, max_block_bytes):
    """Batch tile TB from divisors of N (no batch padding / wasted HBM traffic).
    Prefers an even number of grid steps >= 2 (v7x: 2 TCs share the grid), then
    >= 2 steps, then the largest block that fits the per-generation budget."""
    divisors = [d for d in range(1, n + 1) if n % d == 0]
    feasible = [d for d in divisors if d * per_image_vmem <= max_block_bytes]
    if not feasible:
        return None  # even a single image does not fit -> spatial-split fallback

    def rank(d):
        steps = n // d
        pref = 0 if (steps >= 2 and steps % 2 == 0) else (1 if steps >= 2 else 2)
        return (pref, -(d * per_image_vmem))

    return min(feasible, key=rank)


# ---------------------------------------------------------------------------
# Main fused kernel: pool -> reduce -> ReLU -> expand -> sigmoid -> excite
# ---------------------------------------------------------------------------

def _se_fused_kernel(x_ref, w1t_ref, b1_ref, w2t_ref, b2_ref, o_ref, *, inv_hw):
    # x_ref : (TB, C, HW)   input slab (native dtype)
    # w1t   : (C, rdC)      conv_reduce weight, pre-transposed (f32)
    # b1    : (1, rdC)
    # w2t   : (rdC, C)      conv_expand weight, pre-transposed (f32)
    # b2    : (1, C)
    # o_ref : (TB, C, HW)
    _, _, hw = x_ref.shape

    # squeeze: f32 global average pool. Two-stage when the spatial dim is
    # lane-aligned: per-128-lane chunk adds (VPU) then one lane reduce (XLU).
    if hw % 128 == 0 and hw > 128 and hw // 128 <= 64:
        acc = x_ref[:, :, 0:128].astype(jnp.float32)
        for i in range(1, hw // 128):
            acc = acc + x_ref[:, :, i * 128:(i + 1) * 128]
        pooled = jnp.sum(acc, axis=-1) * inv_hw                         # (TB, C)
    else:
        pooled = jnp.sum(x_ref[...], axis=-1, dtype=jnp.float32) * inv_hw

    # conv_reduce (1x1 conv == channel matmul) + ReLU, f32 on tiny data.
    se = jnp.dot(pooled, w1t_ref[...],
                 preferred_element_type=jnp.float32) + b1_ref[...]      # (TB, rdC)
    se = jnp.maximum(se, 0.0)

    # conv_expand (1x1 conv) + sigmoid gate.
    gate = jnp.dot(se, w2t_ref[...],
                   preferred_element_type=jnp.float32) + b2_ref[...]    # (TB, C)
    gate = jax.nn.sigmoid(gate)

    # excite: re-read x_ref (block already VMEM-resident) so the multi-MiB slab
    # is not held live across the SE math -> clean 1 vld + 1 vst per vreg.
    o_ref[...] = x_ref[...] * gate[:, :, None].astype(o_ref.dtype)


# ---------------------------------------------------------------------------
# Fallback (single image too large for VMEM): spatially-tiled two-kernel path
# ---------------------------------------------------------------------------

def _se_pool_kernel(x_ref, pooled_ref, *, inv_hw, thw, hw, ragged):
    # Accumulate the per-image channel mean over a spatial reduction grid axis.
    s = pl.program_id(1)

    @pl.when(s == 0)
    def _():
        pooled_ref[...] = jnp.zeros_like(pooled_ref)

    xs = x_ref[...]                                     # (1, C, THW)
    if ragged:
        lane = s * thw + jax.lax.broadcasted_iota(jnp.int32, xs.shape, 2)
        xs = jnp.where(lane < hw, xs, jnp.zeros((), xs.dtype))
    pooled_ref[...] += jnp.sum(xs, axis=2, keepdims=True,
                               dtype=jnp.float32) * inv_hw              # (1, C, 1)


def _se_excite_kernel(x_ref, gate_ref, o_ref):
    # gate_ref: (1, C, 1) f32, broadcast multiply over spatial lanes.
    o_ref[...] = x_ref[...] * gate_ref[...].astype(o_ref.dtype)


def _squeeze_excite_spatial_split(x_flat, w1t, b1, w2t, b2,
                                  max_block_bytes, vmem_cap):
    N, C, HW = x_flat.shape
    dtype = x_flat.dtype
    itemsize = jnp.dtype(dtype).itemsize
    row_bytes = _round_up(C, _sublanes(dtype)) * itemsize

    thw = (max_block_bytes // max(row_bytes, 1)) // 128 * 128
    thw = max(thw, 128)
    if thw >= HW:
        thw = HW
    ns = pl.cdiv(HW, thw)
    ragged = (HW % thw) != 0
    block_vmem = _vmem_block_bytes(1, C, thw, dtype)

    # Pass 1: pooled channel means (accumulated across the spatial grid axis).
    pooled = pl.pallas_call(
        functools.partial(_se_pool_kernel, inv_hw=1.0 / HW, thw=thw, hw=HW,
                          ragged=ragged),
        out_shape=jax.ShapeDtypeStruct((N, C, 1), jnp.float32),
        grid_spec=pltpu.PrefetchScalarGridSpec(
            num_scalar_prefetch=0,
            grid=(N, ns),
            in_specs=[pl.BlockSpec((1, C, thw), lambda n, s: (n, 0, s))],
            out_specs=pl.BlockSpec((1, C, 1), lambda n, s: (n, 0, 0)),
        ),
        compiler_params=pltpu.CompilerParams(
            dimension_semantics=("parallel", "arbitrary"),
            vmem_limit_bytes=_vmem_limit(vmem_cap, 2 * block_vmem),
        ),
    )(x_flat)

    # Tiny gate math (a few KB) in plain JAX; negligible next to the slab traffic.
    se = jnp.maximum(pooled[:, :, 0] @ w1t + b1, 0.0)            # (N, rdC)
    gate = jax.nn.sigmoid(se @ w2t + b2)[:, :, None]             # (N, C, 1) f32

    # Pass 2: excite multiply, spatially tiled.
    out = pl.pallas_call(
        _se_excite_kernel,
        out_shape=jax.ShapeDtypeStruct((N, C, HW), dtype),
        grid_spec=pltpu.PrefetchScalarGridSpec(
            num_scalar_prefetch=0,
            grid=(N, ns),
            in_specs=[
                pl.BlockSpec((1, C, thw), lambda n, s: (n, 0, s)),
                pl.BlockSpec((1, C, 1), lambda n, s: (n, 0, 0)),
            ],
            out_specs=pl.BlockSpec((1, C, thw), lambda n, s: (n, 0, s)),
        ),
        compiler_params=pltpu.CompilerParams(
            dimension_semantics=("parallel", "arbitrary"),
            vmem_limit_bytes=_vmem_limit(vmem_cap, 4 * block_vmem),
        ),
    )(x_flat, gate)
    return out


# ---------------------------------------------------------------------------
# Public wrapper
# ---------------------------------------------------------------------------

def squeeze_excite(x, w_reduce, b_reduce, w_expand, b_expand):
    """x: (N, C, H, W) NCHW. Weights are the 1x1 conv kernels squeezed to 2-D:
       w_reduce: (rdC, C), b_reduce: (rdC,), w_expand: (C, rdC), b_expand: (C,)."""
    N, C, H, W = x.shape
    rdC = w_reduce.shape[0]
    HW = H * W

    # (N, C, H, W) -> (N, C, HW): trailing-dim merge, free in XLA (no HBM pass).
    x_flat = x.reshape(N, C, HW)

    # Pre-transposed f32 weights/biases (tiny; fetched once by the pipeline
    # thanks to constant index maps).
    w1t = w_reduce.astype(jnp.float32).T                 # (C, rdC)
    w2t = w_expand.astype(jnp.float32).T                 # (rdC, C)
    b1 = b_reduce.astype(jnp.float32).reshape(1, rdC)
    b2 = b_expand.astype(jnp.float32).reshape(1, C)

    vmem_cap = _vmem_capacity_bytes()
    # ~10% of physical VMEM per x block keeps the double-buffered in+out blocks
    # (4x the block) at ~40% of VMEM on every generation:
    #   v7x (64 MiB)  -> ~6.4 MiB blocks, v5e/v6e (128 MiB) -> ~12.8 MiB blocks.
    max_block_bytes = max(1 << 20, vmem_cap // 10)
    per_image_vmem = _vmem_block_bytes(1, C, HW, x.dtype)

    tb = _pick_batch_tile(N, per_image_vmem, max_block_bytes)
    if tb is None:
        # A single image's (C, HW) block exceeds the VMEM budget: spatial split.
        out_flat = _squeeze_excite_spatial_split(
            x_flat, w1t, b1, w2t, b2, max_block_bytes, vmem_cap)
        return out_flat.reshape(N, C, H, W)

    block_vmem = tb * per_image_vmem
    kernel = functools.partial(_se_fused_kernel, inv_hw=1.0 / HW)

    out_flat = pl.pallas_call(
        kernel,
        out_shape=jax.ShapeDtypeStruct((N, C, HW), x.dtype),
        grid_spec=pltpu.PrefetchScalarGridSpec(
            num_scalar_prefetch=0,
            grid=(N // tb,),
            in_specs=[
                # Full (C, HW) trailing dims: legal block shape even when not
                # (8,128)-aligned -> no host-side padding or output slicing.
                pl.BlockSpec((tb, C, HW), lambda n: (n, 0, 0)),
                pl.BlockSpec((C, rdC), lambda n: (0, 0)),
                pl.BlockSpec((1, rdC), lambda n: (0, 0)),
                pl.BlockSpec((rdC, C), lambda n: (0, 0)),
                pl.BlockSpec((1, C), lambda n: (0, 0)),
            ],
            out_specs=pl.BlockSpec((tb, C, HW), lambda n: (n, 0, 0)),
        ),
        compiler_params=pltpu.CompilerParams(
            # Batch axis is independent -> shard grid across TensorCores (v7x).
            dimension_semantics=("parallel",),
            vmem_limit_bytes=_vmem_limit(vmem_cap, 4 * block_vmem),
        ),
    )(x_flat, w1t, b1, w2t, b2)

    return out_flat.reshape(N, C, H, W)


# ---------------------------------------------------------------------------
# Pure-JAX reference of the PyTorch forward + self-test
# ---------------------------------------------------------------------------

def _reference(x, w1, b1, w2, b2):
    pooled = jnp.mean(x.astype(jnp.float32), axis=(2, 3), keepdims=True)  # (N,C,1,1)
    se = jnp.einsum('rc,ncij->nrij', w1, pooled) + b1[None, :, None, None]
    se = jnp.maximum(se, 0.0)
    gate = jnp.einsum('cr,nrij->ncij', w2, se) + b2[None, :, None, None]
    gate = jax.nn.sigmoid(gate)
    return (x.astype(jnp.float32) * gate).astype(x.dtype)


if __name__ == "__main__":
    # module config: in_chs=4, rd_ratio=0.25 -> rd_channels = round(4 * 0.25) = 1
    N, C, H, W = 2, 4, 16, 16
    rdC = max(1, round(C * 0.25))

    key = jax.random.PRNGKey(0)
    kx, k1, k2, k3, k4 = jax.random.split(key, 5)

    x = jax.random.normal(kx, (N, C, H, W), dtype=jnp.float32)
    # conv_reduce: Conv2d(C, rdC, 1, bias=True) -> weight (rdC, C, 1, 1) squeezed
    w_reduce = jax.random.normal(k1, (rdC, C), dtype=jnp.float32) * 0.5
    b_reduce = jax.random.normal(k2, (rdC,), dtype=jnp.float32) * 0.1
    # conv_expand: Conv2d(rdC, C, 1, bias=True) -> weight (C, rdC, 1, 1) squeezed
    w_expand = jax.random.normal(k3, (C, rdC), dtype=jnp.float32) * 0.5
    b_expand = jax.random.normal(k4, (C,), dtype=jnp.float32) * 0.1

    out = squeeze_excite(x, w_reduce, b_reduce, w_expand, b_expand)
    out = jax.block_until_ready(out)

    ref = _reference(x, w_reduce, b_reduce, w_expand, b_expand)
    assert out.shape == (N, C, H, W)
    assert jnp.allclose(out, ref, atol=1e-5, rtol=1e-5), "mismatch vs reference"

    print("KERNEL_OK")
</pallas_src>

<mosaic_0001>
module attributes {stable_mosaic.version = 11 : i64} {
  func.func @_se_fused_kernel(%arg0: i32, %arg1: memref<1x4x256xf32, #tpu.memory_space<vmem>>, %arg2: memref<4x1xf32, #tpu.memory_space<vmem>>, %arg3: memref<1x1xf32, #tpu.memory_space<vmem>>, %arg4: memref<1x4xf32, #tpu.memory_space<vmem>>, %arg5: memref<1x4xf32, #tpu.memory_space<vmem>>, %arg6: memref<1x4x256xf32, #tpu.memory_space<vmem>>) attributes {dimension_semantics = [#tpu.dimension_semantics<parallel>], iteration_bounds = array<i64: 2>, scalar_prefetch = 0 : i64, scratch_operands = 0 : i64, tpu.core_type = #tpu.core_type<tc>, window_params = [{transform_indices = @transform_0, window_bounds = array<i64: 1, 4, 256>}, {pipeline_mode = #tpu.pipeline_mode<synchronous>, transform_indices = @transform_1, window_bounds = array<i64: 4, 1>}, {pipeline_mode = #tpu.pipeline_mode<synchronous>, transform_indices = @transform_2, window_bounds = array<i64: 1, 1>}, {pipeline_mode = #tpu.pipeline_mode<synchronous>, transform_indices = @transform_3, window_bounds = array<i64: 1, 4>}, {pipeline_mode = #tpu.pipeline_mode<synchronous>, transform_indices = @transform_4, window_bounds = array<i64: 1, 4>}, {transform_indices = @transform_5, window_bounds = array<i64: 1, 4, 256>}]} {
    %c0 = arith.constant 0 : index
    %c0_0 = arith.constant 0 : index
    %c0_1 = arith.constant 0 : index
    %0 = vector.load %arg1[%c0, %c0_0, %c0_1] : memref<1x4x256xf32, #tpu.memory_space<vmem>>, vector<1x4x128xf32>
    %c0_2 = arith.constant 0 : index
    %c0_3 = arith.constant 0 : index
    %c128 = arith.constant 128 : index
    %1 = vector.load %arg1[%c0_2, %c0_3, %c128] : memref<1x4x256xf32, #tpu.memory_space<vmem>>, vector<1x4x128xf32>
    %2 = arith.addf %0, %1 : vector<1x4x128xf32>
    %cst = arith.constant dense<0.000000e+00> : vector<1x4xf32>
    %3 = vector.multi_reduction <add>, %2, %cst [2] : vector<1x4x128xf32> to vector<1x4xf32>
    %cst_4 = arith.constant 3.906250e-03 : f32
    %4 = vector.broadcast %cst_4 : f32 to vector<1x4xf32>
    %5 = arith.mulf %3, %4 : vector<1x4xf32>
    %c0_5 = arith.constant 0 : index
    %c0_6 = arith.constant 0 : index
    %6 = vector.load %arg2[%c0_5, %c0_6] : memref<4x1xf32, #tpu.memory_space<vmem>>, vector<4x1xf32>
    %cst_7 = arith.constant dense<0.000000e+00> : vector<1x1xf32>
    %7 = tpu.matmul %5, %6, %cst_7 {dimension_numbers = #tpu.dot_dimension_numbers<[1], [0], [0], [1], [0, 0, 1, 1], [], []>} : vector<1x4xf32>, vector<4x1xf32>, vector<1x1xf32> -> vector<1x1xf32>
    %c0_8 = arith.constant 0 : index
    %c0_9 = arith.constant 0 : index
    %8 = vector.load %arg3[%c0_8, %c0_9] : memref<1x1xf32, #tpu.memory_space<vmem>>, vector<1x1xf32>
    %9 = arith.addf %7, %8 : vector<1x1xf32>
    %cst_10 = arith.constant 0.000000e+00 : f32
    %10 = vector.broadcast %cst_10 : f32 to vector<1x1xf32>
    %11 = arith.maximumf %9, %10 : vector<1x1xf32>
    %c0_11 = arith.constant 0 : index
    %c0_12 = arith.constant 0 : index
    %12 = vector.load %arg4[%c0_11, %c0_12] : memref<1x4xf32, #tpu.memory_space<vmem>>, vector<1x4xf32>
    %cst_13 = arith.constant dense<0.000000e+00> : vector<1x4xf32>
    %13 = tpu.matmul %11, %12, %cst_13 {dimension_numbers = #tpu.dot_dimension_numbers<[1], [0], [0], [1], [0, 0, 1, 1], [], []>} : vector<1x1xf32>, vector<1x4xf32>, vector<1x4xf32> -> vector<1x4xf32>
    %c0_14 = arith.constant 0 : index
    %c0_15 = arith.constant 0 : index
    %14 = vector.load %arg5[%c0_14, %c0_15] : memref<1x4xf32, #tpu.memory_space<vmem>>, vector<1x4xf32>
    %15 = arith.addf %13, %14 : vector<1x4xf32>
    %16 = arith.negf %15 : vector<1x4xf32>
    %17 = math.exp %16 : vector<1x4xf32>
    %cst_16 = arith.constant 1.000000e+00 : f32
    %18 = vector.broadcast %cst_16 : f32 to vector<1x4xf32>
    %19 = arith.addf %18, %17 : vector<1x4xf32>
    %20 = arith.divf %18, %19 : vector<1x4xf32>
    %c0_17 = arith.constant 0 : index
    %c0_18 = arith.constant 0 : index
    %c0_19 = arith.constant 0 : index
    %21 = vector.load %arg1[%c0_17, %c0_18, %c0_19] : memref<1x4x256xf32, #tpu.memory_space<vmem>>, vector<1x4x256xf32>
    %22 = vector.shape_cast %20 : vector<1x4xf32> to vector<1x4x1xf32>
    %23 = vector.broadcast %22 : vector<1x4x1xf32> to vector<1x4x256xf32>
    %24 = arith.mulf %21, %23 : vector<1x4x256xf32>
    %c0_20 = arith.constant 0 : index
    %c0_21 = arith.constant 0 : index
    %c0_22 = arith.constant 0 : index
    %25 = vector.load %arg6[%c0_20, %c0_21, %c0_22] : memref<1x4x256xf32, #tpu.memory_space<vmem>>, vector<1x4x256xf32>
    tpu.vector_store %arg6[%c0_20, %c0_21, %c0_22], %24 {strides = array<i32>} : memref<1x4x256xf32, #tpu.memory_space<vmem>>, vector<1x4x256xf32>,
    return
  }
  func.func @transform_0(%arg0: i32) -> (i32, i32, i32) {
    %c0_i32 = arith.constant 0 : i32
    %c0_i32_0 = arith.constant 0 : i32
    %c0_i32_1 = arith.constant 0 : i32
    return %arg0, %c0_i32, %c0_i32_0 : i32, i32, i32
  }
  func.func @transform_1(%arg0: i32) -> (i32, i32) {
    %c0_i32 = arith.constant 0 : i32
    %c0_i32_0 = arith.constant 0 : i32
    %c0_i32_1 = arith.constant 0 : i32
    return %c0_i32, %c0_i32_0 : i32, i32
  }
  func.func @transform_2(%arg0: i32) -> (i32, i32) {
    %c0_i32 = arith.constant 0 : i32
    %c0_i32_0 = arith.constant 0 : i32
    %c0_i32_1 = arith.constant 0 : i32
    return %c0_i32, %c0_i32_0 : i32, i32
  }
  func.func @transform_3(%arg0: i32) -> (i32, i32) {
    %c0_i32 = arith.constant 0 : i32
    %c0_i32_0 = arith.constant 0 : i32
    %c0_i32_1 = arith.constant 0 : i32
    return %c0_i32, %c0_i32_0 : i32, i32
  }
  func.func @transform_4(%arg0: i32) -> (i32, i32) {
    %c0_i32 = arith.constant 0 : i32
    %c0_i32_0 = arith.constant 0 : i32
    %c0_i32_1 = arith.constant 0 : i32
    return %c0_i32, %c0_i32_0 : i32, i32
  }
  func.func @transform_5(%arg0: i32) -> (i32, i32, i32) {
    %c0_i32 = arith.constant 0 : i32
    %c0_i32_0 = arith.constant 0 : i32
    %c0_i32_1 = arith.constant 0 : i32
    return %arg0, %c0_i32, %c0_i32_0 : i32, i32, i32
  }
}

</mosaic_0001>

<llo_original>
// kernel: tpu_custom_call.1
$region0: #{tpu_custom_call.1}
  #allocation0 [shape = 'u32[]', space=smem, size = 0x4, offset = 0x4, fixed_abs, tag = 'smem constant byte address 0x4 - core index']
  #allocation1 [shape = 'u32[72,128]{1,0:T(1,128)}', space=vmem, size = 0x9000, scoped, tag = 'internal scratch']
  #allocation2 [shape = 'f32[1,1]{1,0:T(1,128)S(1)}', space=vmem, size = 0x200, scoped, tag = 'scoped memory for tpu_custom_call.1']
  %s0 = inlined_call_operand.hbm [shape: f32[2,4,256], index: 0, kind: input, shape index: {}]
  %s1 = inlined_call_operand.vmem [shape: f32[4,1], index: 1, kind: input, shape index: {}]
  %s2 = inlined_call_operand.<no memory space> [shape: f32[1,1], index: 2, kind: input, shape index: {}]
  %s3 = inlined_call_operand.vmem [shape: f32[1,4], index: 3, kind: input, shape index: {}]
  %s4 = inlined_call_operand.vmem [shape: f32[1,4], index: 4, kind: input, shape index: {}]
  %s5 = inlined_call_operand.hbm [shape: f32[2,4,256], index: 5, kind: output, shape index: {}]
  %s6 = sld [smem:[#allocation0]]
  $region57: #{tpu_custom_call.1} parent=0
    _
  %s8 = ssub.s32 1, %s6
  %s9 = scalar_select 0, %s8, %s6
  %v10 = vstv %s2
  %11 = vst [vmem:[#allocation2] sm:$0x1] %v10
  $region1: #{tpu_custom_call.1} parent=0
    #allocation3 [shape = 'u8[8192]{0}', space=vmem, size = 0x2000, scoped, tag = 'input window, operand 0']
    #allocation4 [shape = 's32[2]{0}', space=sflag, size = 0x8, scoped, tag = 'scoped memory for tpu_custom_call.1']
    #allocation5 [shape = 's32[2]{0}', space=sflag, size = 0x8, scoped, tag = 'scoped memory for tpu_custom_call.1']
    #allocation6 [shape = 'u8[8192]{0}', space=vmem, size = 0x2000, scoped, tag = 'output window, operand 0']
    %12 = vsyncpa [#allocation4], 0
    %s13 = scalar_lea.sflag [#allocation4], 1
    %14 = vsyncpa %s13, 0
    %15 = vsyncpa [#allocation5], 0
    %s16 = scalar_lea.sflag [#allocation5], 1
    %17 = vsyncpa %s16, 0
    loop: start=0, step=1, limit=4
    $region2: #{tpu_custom_call.1} parent=1 // loop_pre_header
      _
    $region3: #{tpu_custom_call.1} parent=1 // loop_header
      %s19 = sphi 0, %s23
      %p20 = scmp.ge.s32.totalorder %s19, 4
      %s29 = sphi 0, %s31
      %s32 = sphi 0, %s29
      %s33 = sphi 0, %s32
      %s49 = sphi 0, %s33
      %s53 = sphi 0, %s53
      %s55 = sphi 0, %s53
      %s56 = sphi 0, %s55
      %s70 = sphi 0, %s56
      %s74 = sphi 0, %s74
      %s76 = sphi 0, %s74
      %s77 = sphi 0, %s76
      %s91 = sphi 0, %s77
      %s95 = sphi 0, %s95
      %s97 = sphi 0, %s95
      %s98 = sphi 0, %s97
      %s112 = sphi 0, %s98
      %s116 = sphi 0, %s116
      %s118 = sphi 0, %s116
      %s119 = sphi 0, %s118
      %s133 = sphi 0, %s119
      %s139 = sphi 0, %s141
      %s142 = sphi 0, %s139
      %s143 = sphi 0, %s142
      %s159 = sphi 0, %s143
    $region4: #{tpu_custom_call.1} parent=1 // loop_header_branch
      %22 = sbr.rel (%p20) target = $region8
    $region5: #{tpu_custom_call.1} parent=1 // loop_body
      %s24 = ssub.s32 %s19, 1
      %s25 = ssub.s32 %s19, 2
      %s26 = sadd.s32 %s19, 1
      %s27 = ssub.s32 %s19, %s26
      %p28 = scmp.eq.s32.totalorder %s27, 0
      %s30 = sadd.s32 %s29, 1
      %s31 = scalar_select %p28, %s29, %s30
      %p34 = pneg %p28
      %p35 = scmp.eq.s32.totalorder %s19, 1
      %p36 = por %p34, %p35
      %p37 = scmp.ne.s32.totalorder %s29, %s32
      %p38 = scmp.eq.s32.totalorder %s19, 0
      %p39 = por %p37, %p38
      %p40 = scmp.ne.s32.totalorder %s29, %s32
      %p41 = scmp.eq.s32.totalorder %s24, 1
      %p42 = por %p40, %p41
      %p43 = scmp.ne.s32.totalorder %s32, %s33
      %p44 = scmp.eq.s32.totalorder %s24, 0
      %p45 = por %p43, %p44
      %p46 = scmp.ne.s32.totalorder %s32, %s33
      %p47 = scmp.eq.s32.totalorder %s25, 1
      %p48 = por %p46, %p47
      %p50 = scmp.ne.s32.totalorder %s33, %s49
      %p51 = scmp.eq.s32.totalorder %s25, 0
      %p52 = por %p50, %p51
      %s54 = sadd.s32 %s53, 1
      %p57 = scmp.eq.s32.totalorder %s19, 1
      %p58 = scmp.ne.s32.totalorder %s53, %s55
      %p59 = scmp.eq.s32.totalorder %s19, 0
      %p60 = por %p58, %p59
      %p61 = scmp.ne.s32.totalorder %s53, %s55
      %p62 = scmp.eq.s32.totalorder %s24, 1
      %p63 = por %p61, %p62
      %p64 = scmp.ne.s32.totalorder %s55, %s56
      %p65 = scmp.eq.s32.totalorder %s24, 0
      %p66 = por %p64, %p65
      %p67 = scmp.ne.s32.totalorder %s55, %s56
      %p68 = scmp.eq.s32.totalorder %s25, 1
      %p69 = por %p67, %p68
      %p71 = scmp.ne.s32.totalorder %s56, %s70
      %p72 = scmp.eq.s32.totalorder %s25, 0
      %p73 = por %p71, %p72
      %s75 = sadd.s32 %s74, 1
      %p78 = scmp.eq.s32.totalorder %s19, 1
      %p79 = scmp.ne.s32.totalorder %s74, %s76
      %p80 = scmp.eq.s32.totalorder %s19, 0
      %p81 = por %p79, %p80
      %p82 = scmp.ne.s32.totalorder %s74, %s76
      %p83 = scmp.eq.s32.totalorder %s24, 1
      %p84 = por %p82, %p83
      %p85 = scmp.ne.s32.totalorder %s76, %s77
      %p86 = scmp.eq.s32.totalorder %s24, 0
      %p87 = por %p85, %p86
      %p88 = scmp.ne.s32.totalorder %s76, %s77
      %p89 = scmp.eq.s32.totalorder %s25, 1
      %p90 = por %p88, %p89
      %p92 = scmp.ne.s32.totalorder %s77, %s91
      %p93 = scmp.eq.s32.totalorder %s25, 0
      %p94 = por %p92, %p93
      %s96 = sadd.s32 %s95, 1
      %p99 = scmp.eq.s32.totalorder %s19, 1
      %p100 = scmp.ne.s32.totalorder %s95, %s97
      %p101 = scmp.eq.s32.totalorder %s19, 0
      %p102 = por %p100, %p101
      %p103 = scmp.ne.s32.totalorder %s95, %s97
      %p104 = scmp.eq.s32.totalorder %s24, 1
      %p105 = por %p103, %p104
      %p106 = scmp.ne.s32.totalorder %s97, %s98
      %p107 = scmp.eq.s32.totalorder %s24, 0
      %p108 = por %p106, %p107
      %p109 = scmp.ne.s32.totalorder %s97, %s98
      %p110 = scmp.eq.s32.totalorder %s25, 1
      %p111 = por %p109, %p110
      %p113 = scmp.ne.s32.totalorder %s98, %s112
      %p114 = scmp.eq.s32.totalorder %s25, 0
      %p115 = por %p113, %p114
      %s117 = sadd.s32 %s116, 1
      %p120 = scmp.eq.s32.totalorder %s19, 1
      %p121 = scmp.ne.s32.totalorder %s116, %s118
      %p122 = scmp.eq.s32.totalorder %s19, 0
      %p123 = por %p121, %p122
      %p124 = scmp.ne.s32.totalorder %s116, %s118
      %p125 = scmp.eq.s32.totalorder %s24, 1
      %p126 = por %p124, %p125
      %p127 = scmp.ne.s32.totalorder %s118, %s119
      %p128 = scmp.eq.s32.totalorder %s24, 0
      %p129 = por %p127, %p128
      %p130 = scmp.ne.s32.totalorder %s118, %s119
      %p131 = scmp.eq.s32.totalorder %s25, 1
      %p132 = por %p130, %p131
      %p134 = scmp.ne.s32.totalorder %s119, %s133
      %p135 = scmp.eq.s32.totalorder %s25, 0
      %p136 = por %p134, %p135
      %s137 = ssub.s32 %s19, %s26
      %p138 = scmp.eq.s32.totalorder %s137, 0
      %s140 = sadd.s32 %s139, 1
      %s141 = scalar_select %p138, %s139, %s140
      %p144 = pneg %p138
      %p145 = scmp.eq.s32.totalorder %s19, 1
      %p146 = por %p144, %p145
      %p147 = scmp.ne.s32.totalorder %s139, %s142
      %p148 = scmp.eq.s32.totalorder %s19, 0
      %p149 = por %p147, %p148
      %p150 = scmp.ne.s32.totalorder %s139, %s142
      %p151 = scmp.eq.s32.totalorder %s24, 1
      %p152 = por %p150, %p151
      %p153 = scmp.ne.s32.totalorder %s142, %s143
      %p154 = scmp.eq.s32.totalorder %s24, 0
      %p155 = por %p153, %p154
      %p156 = scmp.ne.s32.totalorder %s142, %s143
      %p157 = scmp.eq.s32.totalorder %s25, 1
      %p158 = por %p156, %p157
      %p160 = scmp.ne.s32.totalorder %s143, %s159
      %p161 = scmp.eq.s32.totalorder %s25, 0
      %p162 = por %p160, %p161
      %p163 = scmp.le.s32.totalorder 1, %s19
      %p164 = scmp.lt.s32.totalorder %s19, 3
      %p165 = pnand %p163, %p164
      %p166 = pneg %p165
      // Predicated region
      $region9: #{tpu_custom_call.1} parent=5 // pred_check
        _
      $region10: #{tpu_custom_call.1} parent=5 // pred_check_branch
        %168 = sbr.rel (%p165) target = $region12
      $region11: #{tpu_custom_call.1} parent=5 // pred_region
        %s169 = ssub.s32 %s19, 1
        // Predicated region
        $region13: #{tpu_custom_call.1} parent=11 // pred_check
          %p170 = pneg %p66
        $region14: #{tpu_custom_call.1} parent=11 // pred_check_branch
          %172 = sbr.rel (%p170) target = $region16
        $region15: #{tpu_custom_call.1} parent=11 // pred_region
          _
        $region16: #{tpu_custom_call.1} parent=11 // pred_fallthru
          _
        // Predicated region
        $region17: #{tpu_custom_call.1} parent=11 // pred_check
          %p173 = pneg %p87
        $region18: #{tpu_custom_call.1} parent=11 // pred_check_branch
          %175 = sbr.rel (%p173) target = $region20
        $region19: #{tpu_custom_call.1} parent=11 // pred_region
          _
        $region20: #{tpu_custom_call.1} parent=11 // pred_fallthru
          _
        // Predicated region
        $region21: #{tpu_custom_call.1} parent=11 // pred_check
          %p176 = pneg %p108
        $region22: #{tpu_custom_call.1} parent=11 // pred_check_branch
          %178 = sbr.rel (%p176) target = $region24
        $region23: #{tpu_custom_call.1} parent=11 // pred_region
          _
        $region24: #{tpu_custom_call.1} parent=11 // pred_fallthru
          _
        // Predicated region
        $region25: #{tpu_custom_call.1} parent=11 // pred_check
          %p179 = pneg %p129
        $region26: #{tpu_custom_call.1} parent=11 // pred_check_branch
          %181 = sbr.rel (%p179) target = $region28
        $region27: #{tpu_custom_call.1} parent=11 // pred_region
          _
        $region28: #{tpu_custom_call.1} parent=11 // pred_fallthru
          _
      $region12: #{tpu_custom_call.1} parent=5 // pred_fallthru
        _
      %p182 = scmp.lt.s32.totalorder %s19, 2
      // Predicated region
      $region29: #{tpu_custom_call.1} parent=5 // pred_check
        %p183 = pneg %p182
      $region30: #{tpu_custom_call.1} parent=5 // pred_check_branch
        %185 = sbr.rel (%p183) target = $region32
      $region31: #{tpu_custom_call.1} parent=5 // pred_region
        // Predicated region
        $region33: #{tpu_custom_call.1} parent=31 // pred_check
          %p186 = pneg %p39
        $region34: #{tpu_custom_call.1} parent=31 // pred_check_branch
          %188 = sbr.rel (%p186) target = $region36
        $region35: #{tpu_custom_call.1} parent=31 // pred_region
          %s189 = sand.u32 %s29, 1
          %s190 = scalar_lea.sflag [#allocation4], %s189
          %s191 = sand.u32 %s29, 1
          %s192 = smul.addr %s191, 8
          %s193 = scalar_lea.vmem [#allocation3], %s192
          %195 = vsyncadd %s190, 0
          %s196 = smul.addr %s19, 2
          %s197 = smul.addr %s196, 4
          %s198 = scalar_lea.hbm %s0, %s197
          %s200 = sshll.u32 %s198, 4
          %s201 = int_to_ptr.hbm [resolvable:$true] %s200
          %s202 = sshll.u32 %s193, 4
          %s203 = int_to_ptr.vmem [resolvable:$true] %s202
          %205 = dma.hbm_to_vmem [thread:$0]  %s201, 128, %s203, %s190
        $region36: #{tpu_custom_call.1} parent=31 // pred_fallthru
          _
      $region32: #{tpu_custom_call.1} parent=5 // pred_fallthru
        _
      %p206 = scmp.le.s32.totalorder 1, %s19
      %p207 = scmp.lt.s32.totalorder %s19, 3
      %p208 = pnand %p206, %p207
      %p209 = pneg %p208
      // Predicated region
      $region37: #{tpu_custom_call.1} parent=5 // pred_check
        _
      $region38: #{tpu_custom_call.1} parent=5 // pred_check_branch
        %211 = sbr.rel (%p208) target = $region40
      $region39: #{tpu_custom_call.1} parent=5 // pred_region
        %s212 = ssub.s32 %s19, 1
        %s213 = sand.u32 %s32, 1
        %s214 = scalar_lea.sflag [#allocation4], %s213
        %s215 = sand.u32 %s32, 1
        %s216 = smul.addr %s215, 8
        %s217 = scalar_lea.vmem [#allocation3], %s216
        // Predicated region
        $region41: #{tpu_custom_call.1} parent=39 // pred_check
          %p218 = pneg %p45
        $region42: #{tpu_custom_call.1} parent=39 // pred_check_branch
          %220 = sbr.rel (%p218) target = $region44
        $region43: #{tpu_custom_call.1} parent=39 // pred_region
          %222 = dma.done %s214, 128
        $region44: #{tpu_custom_call.1} parent=39 // pred_fallthru
          _
        %s223 = sand.u32 %s32, 1
        %s224 = scalar_lea.sflag [#allocation4], %s223
        %s225 = sand.u32 %s32, 1
        %s226 = smul.addr %s225, 8
        %s227 = scalar_lea.vmem [#allocation3], %s226
        %p228 = pneg %p45
        %p229 = pneg %p42
        %p230 = pneg %p66
        %p231 = pneg %p63
        %p232 = pneg %p87
        %p233 = pneg %p84
        %p234 = pneg %p108
        %p235 = pneg %p105
        %p236 = pneg %p129
        %p237 = pneg %p126
        %p238 = pneg %p155
        %p239 = pneg %p152
        %s240 = sand.u32 %s142, 1
        %s241 = scalar_lea.sflag [#allocation5], %s240
        %s242 = sand.u32 %s142, 1
        %s243 = smul.addr %s242, 8
        %s244 = scalar_lea.vmem [#allocation6], %s243
        %v245 = vld [vmem:[%s217] sm:$0xf]
        %v246 = vld [vmem:[%s217 + $0x4] sm:$0xf]
        %v247 = vadd.f32 %v245, %v246
        %vm248 = vcmask 1043456
        %v249 = vsel %vm248, %v247, 0.0
        %250 = vadd.xlane.f32.xlu0 %v249
        %v251 = vpop.xlane.xlu0 %250
        %v252 = vmul.f32 %v251, 0.00390625
        %v253 = vld [vmem:[%s1] sm:$0xf]
        %v254 = vld [vmem:[#allocation2] sm:$0x1]
        %v256 = vlaneseq
        %v257 = vand.u32 %v256, 127
        %v258 = vperm.slane %v252, %v257
        %vm259 = vcmask 31744
        %v260 = vsel %vm259, %v258, 0
        %v263 = vsel %vm248, %v253, 0
        %265 = vmatpush.msra.mxu0 0.0
        %266 = vmatpush.msra.mxu0 0.0
        %267 = vmatpush.msra.mxu0 0.0
        %268 = vmatpush.msra.mxu0 0.0
        %269 = vmatpush.msra.mxu0 0.0
        %270 = vmatpush.msra.mxu0 0.0
        %271 = vmatpush.msra.mxu0 0.0
        %272 = vmatpush.msra.mxu0 0.0
        %273 = vmatpush.msra.mxu0 0.0
        %274 = vmatpush.msra.mxu0 0.0
        %275 = vmatpush.msra.mxu0 0.0
        %276 = vmatpush.msra.mxu0 0.0
        %277 = vmatpush.msra.mxu0 0.0
        %278 = vmatpush.msra.mxu0 0.0
        %279 = vmatpush.msra.mxu0 0.0
        %280 = vmatpush.msra.mxu0 %v263
        %281 = vmatmul.f32.gmra.mxu0 %v260
        %v282 = vpop.f32.mrf.mxu0
        %v283 = vadd.f32 %v254, %v282
        %284 = vdwg.mxu0
        %v285 = vmax.f32 %v283, 0.0
        %v286 = vld [vmem:[%s3] sm:$0x1]
        %v287 = vld [vmem:[%s4] sm:$0x1]
        %vm288 = vcmask 7168
        %v290 = vsel %vm288, %v285, 0
        %vm292 = vcmask 1040384
        %v294 = vsel %vm292, %v286, 0
        %296 = vmatpush.msra.mxu0 0.0
        %297 = vmatpush.msra.mxu0 0.0
        %298 = vmatpush.msra.mxu0 0.0
        %299 = vmatpush.msra.mxu0 0.0
        %300 = vmatpush.msra.mxu0 0.0
        %301 = vmatpush.msra.mxu0 0.0
        %302 = vmatpush.msra.mxu0 0.0
        %303 = vmatpush.msra.mxu0 0.0
        %304 = vmatpush.msra.mxu0 0.0
        %305 = vmatpush.msra.mxu0 0.0
        %306 = vmatpush.msra.mxu0 0.0
        %307 = vmatpush.msra.mxu0 0.0
        %308 = vmatpush.msra.mxu0 0.0
        %309 = vmatpush.msra.mxu0 0.0
        %310 = vmatpush.msra.mxu0 0.0
        %311 = vmatpush.msra.mxu0 %v294
        %312 = vmatmul.f32.gmra.mxu0 %v290
        %v313 = vpop.f32.mrf.mxu0
        %v314 = vadd.f32 %v287, %v313
        %315 = vdwg.mxu0
        %v316 = vxor.u32 %v314, 2147483648
        %v317 = vmul.f32 %v316, 1.442695
        %v318 = vpow.pop %v317
        %v319 = vadd.f32 %v318, 1.0
        %v320 = vrcp.pop %v319
        %v321 = vmul.f32 %v319, %v320
        %v322 = vsub.f32 1.0, %v321
        %v323 = vmul.f32 %v320, %v322
        %v324 = vadd.f32 %v320, %v323
        %vm325 = vweird.f32 %v319
        %vm326 = vweird.f32 %v320
        %vm327 = vmor %vm325, %vm326
        %v328 = vsel %vm327, %v320, %v324
        %v329 = vand.u32 2147483647, %v319
        %vm330 = vcmp.eq.f32.partialorder %v329, 8.507059e+37
        %v331 = vand.u32 %v319, 2147483648
        %v332 = vor.u32 1.1754944e-38, %v331
        %v333 = vsel %vm330, %v332, %v328
        %v334 = vmul.f32 1.0, %v333
        %v335 = vld [vmem:[%s217] sm:$0xff]
        %v336 = vperm.slane %v334, 0
        %v337 = vlaneseq
        %v338 = vshrl.u32 %v337, 7
        %340 = vset.pattern.permute.xlu0 %v338
        %341 = vperm.xlu0 %340, %v336
        %v342 = vpop.permute.xlu0 %341
        %v345 = vunpack.c.l.s4 839922192
        %v346 = vunpack.c.0.s8 %v345
        %v347 = vperm.slane %v342, %v346
        %v349 = vmul.f32 %v335, %v347
        %350 = vst [vmem:[%s244] sm:$0xff] %v349
        %s351 = sand.u32 %s142, 1
        %s352 = scalar_lea.sflag [#allocation5], %s351
        %s353 = sand.u32 %s142, 1
        %s354 = smul.addr %s353, 8
        %s355 = scalar_lea.vmem [#allocation6], %s354
        // Predicated region
        $region45: #{tpu_custom_call.1} parent=39 // pred_check
          %p356 = pneg %p152
        $region46: #{tpu_custom_call.1} parent=39 // pred_check_branch
          %358 = sbr.rel (%p356) target = $region48
        $region47: #{tpu_custom_call.1} parent=39 // pred_region
          %360 = vsyncadd %s352, 0
          %s361 = smul.addr %s24, 2
          %s362 = smul.addr %s361, 4
          %s363 = scalar_lea.hbm %s5, %s362
          %s365 = sshll.u32 %s355, 4
          %s366 = int_to_ptr.vmem [resolvable:$true] %s365
          %s367 = sshll.u32 %s363, 4
          %s368 = int_to_ptr.hbm [resolvable:$true] %s367
          %370 = dma.vmem_to_hbm [thread:$0]  %s366, 128, %s368, %s352
        $region48: #{tpu_custom_call.1} parent=39 // pred_fallthru
          _
      $region40: #{tpu_custom_call.1} parent=5 // pred_fallthru
        _
      %p371 = scmp.le.s32.totalorder 2, %s19
      // Predicated region
      $region49: #{tpu_custom_call.1} parent=5 // pred_check
        %p372 = pneg %p371
      $region50: #{tpu_custom_call.1} parent=5 // pred_check_branch
        %374 = sbr.rel (%p372) target = $region52
      $region51: #{tpu_custom_call.1} parent=5 // pred_region
        %s375 = ssub.s32 %s19, 2
        // Predicated region
        $region53: #{tpu_custom_call.1} parent=51 // pred_check
          %p376 = pneg %p158
        $region54: #{tpu_custom_call.1} parent=51 // pred_check_branch
          %378 = sbr.rel (%p376) target = $region56
        $region55: #{tpu_custom_call.1} parent=51 // pred_region
          %s379 = sand.u32 %s143, 1
          %s380 = scalar_lea.sflag [#allocation5], %s379
          %s381 = sand.u32 %s143, 1
          %s382 = smul.addr %s381, 8
          %s383 = scalar_lea.vmem [#allocation6], %s382
          %385 = dma.done %s380, 128
        $region56: #{tpu_custom_call.1} parent=51 // pred_fallthru
          _
      $region52: #{tpu_custom_call.1} parent=5 // pred_fallthru
        _
    $region6: #{tpu_custom_call.1} parent=1 // loop_footer
      %s23 = sadd.s32 1, %s19
    $region7: #{tpu_custom_call.1} parent=1 // loop_footer_branch
      %18 = sbr.rel target = $region3
    $region8: #{tpu_custom_call.1} parent=1 // loop_exit
      _
    %386 = vsyncpa [#allocation4], 1
    %s387 = scalar_lea.sflag [#allocation4], 1
    %388 = vsyncpa %s387, 1
    %389 = vsyncpa [#allocation5], 1
    %s390 = scalar_lea.sflag [#allocation5], 1
    %391 = vsyncpa %s390, 1

</llo_original>
